<compile_context>
chip_gen: v7x
topology: tpu7x:2x2x1
jax: 0.10.0
libtpu: 0.0.40
codegen_flags: <defaults>
</compile_context>

<pallas_src>
import functools
import math

import jax
import jax.numpy as jnp
from jax.experimental import pallas as pl
from jax.experimental.pallas import tpu as pltpu


def _round_up(x, m):
    return ((x + m - 1) // m) * m


def _flash_attention_kernel(q_ref, k_ref, v_ref, o_ref,
                            q_sc, m_sc, l_sc, acc_sc,
                            *, scale, k_block, kv_len, needs_mask,
                            compute_dtype):
    kv = pl.program_id(2)
    last_kv = pl.num_programs(2) - 1

    @pl.when(kv == 0)
    def _():
        # Q tile is constant across the kv loop for a given (batch, q-tile):
        # scale in f32 and cast to the MXU compute dtype exactly once.
        q_sc[...] = (q_ref[...].astype(jnp.float32) * scale).astype(compute_dtype)
        m_sc[...] = jnp.full(m_sc.shape, -jnp.inf, dtype=jnp.float32)
        l_sc[...] = jnp.zeros(l_sc.shape, dtype=jnp.float32)
        acc_sc[...] = jnp.zeros(acc_sc.shape, dtype=jnp.float32)

    def step(mask_cols):
        # QK^T on the MXU in compute_dtype (bf16 by default), f32 accumulate.
        s = jax.lax.dot_general(                              # (tq, tk)
            q_sc[...], k_ref[...].astype(compute_dtype),
            (((1,), (1,)), ((), ())),
            preferred_element_type=jnp.float32)

        if mask_cols:  # only traced for the branch handling the last kv tile
            col = kv * k_block + jax.lax.broadcasted_iota(jnp.int32, s.shape, 1)
            s = jnp.where(col < kv_len, s, -1e30)

        # Online (flash) softmax update in f32.
        m_prev = m_sc[...]
        m_new = jnp.maximum(m_prev, jnp.max(s, axis=-1, keepdims=True))
        alpha = jnp.exp(m_prev - m_new)
        p = jnp.exp(s - m_new)
        l_sc[...] = alpha * l_sc[...] + jnp.sum(p, axis=-1, keepdims=True)
        acc_sc[...] = alpha * acc_sc[...] + jnp.dot(
            p.astype(compute_dtype), v_ref[...].astype(compute_dtype),
            preferred_element_type=jnp.float32)
        m_sc[...] = m_new

    if needs_mask:
        # Only the final kv tile contains padded key columns; keep the hot
        # path free of iota/compare/select work.
        @pl.when(kv != last_kv)
        def _():
            step(False)

        @pl.when(kv == last_kv)
        def _():
            step(True)
    else:
        step(False)

    @pl.when(kv == last_kv)
    def _():
        # Deferred normalization: one reciprocal per output row, off the kv
        # hot loop, full f32 accuracy.
        o_ref[...] = (acc_sc[...] * pl.reciprocal(l_sc[...], approx=False)
                      ).astype(o_ref.dtype)


def dot_product_attention(queries, keys, values, *, q_block=None, k_block=None,
                          compute_dtype=jnp.bfloat16):
    """Pallas TPU implementation of DotProductAttention.forward (eval mode)."""
    B, Lq, D = queries.shape
    Bk, Lk, Dk = keys.shape
    Bv, Lv, Dv = values.shape
    assert B == Bk == Bv and D == Dk and Lk == Lv and Lk >= 1

    out_dtype = queries.dtype
    scale = 1.0 / math.sqrt(D)

    # Head dims: no padding for Q/K (block last dim == full array dim is
    # legal); pad Dv to a lane-dense multiple of 128 only when it isn't one
    # already (lane-dense output stores are the cheap, unmasked path).
    Dvp = Dv if Dv % 128 == 0 else _round_up(Dv, 128)

    # Flash tiles over Lq / Lk.  Defaults (512/512) keep the kv loop
    # MXU-bound at bf16 on v6e/v7x while staying a few MiB in VMEM
    # (double-buffered Q/K/V/O tiles + f32 accumulator + s/p temporaries),
    # comfortably under v7x's 64 MiB per-TC VMEM.  Override via q_block/k_block.
    tq = _round_up(min(q_block or 512, _round_up(Lq, 8)), 8)
    tk = _round_up(min(k_block or 512, _round_up(Lk, 8)), 8)
    Lqp = _round_up(Lq, tq)
    Lkp = _round_up(Lk, tk)
    needs_mask = Lkp != Lk  # padded key rows must be masked out of the softmax

    def _pad(x, rows, cols):
        pr, pc = rows - x.shape[1], cols - x.shape[2]
        if pr or pc:
            x = jnp.pad(x, ((0, 0), (0, pr), (0, pc)))
        return x

    q = _pad(queries, Lqp, D)
    k = _pad(keys, Lkp, D)
    v = _pad(values, Lkp, Dvp)

    grid = (B, Lqp // tq, Lkp // tk)

    kernel = functools.partial(
        _flash_attention_kernel,
        scale=scale, k_block=tk, kv_len=Lk, needs_mask=needs_mask,
        compute_dtype=compute_dtype)

    out = pl.pallas_call(
        kernel,
        out_shape=jax.ShapeDtypeStruct((B, Lqp, Dvp), out_dtype),
        grid_spec=pltpu.PrefetchScalarGridSpec(
            num_scalar_prefetch=0,
            grid=grid,
            in_specs=[
                # Leading batch dim squeezed out of the kernel view (2-D tiles).
                pl.BlockSpec((None, tq, D), lambda b, qi, ki: (b, qi, 0)),
                pl.BlockSpec((None, tk, D), lambda b, qi, ki: (b, ki, 0)),
                pl.BlockSpec((None, tk, Dvp), lambda b, qi, ki: (b, ki, 0)),
            ],
            out_specs=pl.BlockSpec((None, tq, Dvp), lambda b, qi, ki: (b, qi, 0)),
            scratch_shapes=[
                pltpu.VMEM((tq, D), compute_dtype),  # scaled+cast Q (hoisted)
                pltpu.VMEM((tq, 1), jnp.float32),    # running max m
                pltpu.VMEM((tq, 1), jnp.float32),    # running denom l
                pltpu.VMEM((tq, Dvp), jnp.float32),  # f32 output accumulator
            ],
        ),
        compiler_params=pltpu.CompilerParams(
            dimension_semantics=("parallel", "parallel", "arbitrary"),
            vmem_limit_bytes=48 * 1024 * 1024,
        ),
    )(q, k, v)

    # Drop padded query rows / value columns (only when something was padded).
    if Lqp != Lq or Dvp != Dv:
        out = out[:, :Lq, :Dv]
    return out


def _reference(queries, keys, values):
    d = queries.shape[-1]
    scores = jnp.einsum("bqd,bkd->bqk", queries, keys) / jnp.sqrt(
        jnp.float32(d))
    w = jax.nn.softmax(scores, axis=-1)
    return jnp.einsum("bqk,bkd->bqd", w, values)


if __name__ == "__main__":
    key = jax.random.PRNGKey(0)
    kq, kk, kv_key = jax.random.split(key, 3)

    # Small shapes consistent with the module (batch-first bmm convention).
    B, Lq, Lk, D, Dv = 2, 8, 8, 32, 32
    queries = jax.random.normal(kq, (B, Lq, D), dtype=jnp.float32)
    keys = jax.random.normal(kk, (B, Lk, D), dtype=jnp.float32)
    values = jax.random.normal(kv_key, (B, Lk, Dv), dtype=jnp.float32)

    # Default path: bf16 MXU operands, f32 accumulation/softmax stats.
    out = jax.block_until_ready(dot_product_attention(queries, keys, values))
    ref = _reference(queries, keys, values)
    assert out.shape == (B, Lq, Dv)
    assert jnp.allclose(out, ref, atol=2e-2, rtol=2e-2), "bf16 path mismatch"

    # Second check: ragged lengths + forced small tiles to exercise the
    # multi-tile online-softmax path and the padded-key (last-tile-only) mask.
    B2, Lq2, Lk2 = 2, 24, 35
    q2 = jax.random.normal(kq, (B2, Lq2, D), dtype=jnp.float32)
    k2 = jax.random.normal(kk, (B2, Lk2, D), dtype=jnp.float32)
    v2 = jax.random.normal(kv_key, (B2, Lk2, Dv), dtype=jnp.float32)
    ref2 = _reference(q2, k2, v2)

    out2 = jax.block_until_ready(
        dot_product_attention(q2, k2, v2, q_block=8, k_block=8))
    assert out2.shape == (B2, Lq2, Dv)
    assert jnp.allclose(out2, ref2, atol=2e-2, rtol=2e-2), "flash bf16 mismatch"

    # Same shapes with f32 compute to verify algorithmic exactness tightly.
    out2_f32 = jax.block_until_ready(
        dot_product_attention(q2, k2, v2, q_block=8, k_block=8,
                              compute_dtype=jnp.float32))
    assert jnp.allclose(out2_f32, ref2, atol=1e-4, rtol=1e-4), "f32 mismatch"

    print("KERNEL_OK")
</pallas_src>

<mosaic_0001>
module attributes {stable_mosaic.version = 11 : i64} {
  func.func @_flash_attention_kernel(%arg0: i32, %arg1: i32, %arg2: i32, %arg3: memref<1x8x32xf32, #tpu.memory_space<vmem>>, %arg4: memref<1x8x32xf32, #tpu.memory_space<vmem>>, %arg5: memref<1x8x128xf32, #tpu.memory_space<vmem>>, %arg6: memref<1x8x128xf32, #tpu.memory_space<vmem>>, %arg7: memref<8x32xbf16, #tpu.memory_space<vmem>>, %arg8: memref<8x1xf32, #tpu.memory_space<vmem>>, %arg9: memref<8x1xf32, #tpu.memory_space<vmem>>, %arg10: memref<8x128xf32, #tpu.memory_space<vmem>>) attributes {dimension_semantics = [#tpu.dimension_semantics<parallel>, #tpu.dimension_semantics<parallel>, #tpu.dimension_semantics<arbitrary>], iteration_bounds = array<i64: 2, 1, 1>, scalar_prefetch = 0 : i64, scratch_operands = 4 : i64, tpu.core_type = #tpu.core_type<tc>, window_params = [{transform_indices = @transform_0, window_bounds = array<i64: 1, 8, 32>}, {transform_indices = @transform_1, window_bounds = array<i64: 1, 8, 32>}, {transform_indices = @transform_2, window_bounds = array<i64: 1, 8, 128>}, {transform_indices = @transform_3, window_bounds = array<i64: 1, 8, 128>}]} {
    %c0_i32 = arith.constant 0 : i32
    %0 = arith.cmpi eq, %arg2, %c0_i32 : i32
    %1 = arith.extui %0 : i1 to i32
    %c0_i32_0 = arith.constant 0 : i32
    %2 = arith.cmpi ne, %1, %c0_i32_0 : i32
    scf.if %2 {
      %c0_25 = arith.constant 0 : index
      %c0_26 = arith.constant 0 : index
      %c0_27 = arith.constant 0 : index
      %37 = vector.load %arg3[%c0_25, %c0_26, %c0_27] : memref<1x8x32xf32, #tpu.memory_space<vmem>>, vector<1x8x32xf32>
      %38 = vector.shape_cast %37 : vector<1x8x32xf32> to vector<8x32xf32>
      %cst_28 = arith.constant 0.176776692 : f32
      %39 = vector.broadcast %cst_28 : f32 to vector<8x32xf32>
      %40 = arith.mulf %38, %39 : vector<8x32xf32>
      %41 = arith.truncf %40 : vector<8x32xf32> to vector<8x32xbf16>
      %c0_29 = arith.constant 0 : index
      %c0_30 = arith.constant 0 : index
      %42 = vector.load %arg7[%c0_29, %c0_30] : memref<8x32xbf16, #tpu.memory_space<vmem>>, vector<8x32xbf16>
      tpu.vector_store %arg7[%c0_29, %c0_30], %41 {strides = array<i32>} : memref<8x32xbf16, #tpu.memory_space<vmem>>, vector<8x32xbf16>,
      %cst_31 = arith.constant 0xFF800000 : f32
      %43 = vector.broadcast %cst_31 : f32 to vector<8x1xf32>
      %c0_32 = arith.constant 0 : index
      %c0_33 = arith.constant 0 : index
      %44 = vector.load %arg8[%c0_32, %c0_33] : memref<8x1xf32, #tpu.memory_space<vmem>>, vector<8x1xf32>
      tpu.vector_store %arg8[%c0_32, %c0_33], %43 {strides = array<i32>} : memref<8x1xf32, #tpu.memory_space<vmem>>, vector<8x1xf32>,
      %cst_34 = arith.constant 0.000000e+00 : f32
      %45 = vector.broadcast %cst_34 : f32 to vector<8x1xf32>
      %c0_35 = arith.constant 0 : index
      %c0_36 = arith.constant 0 : index
      %46 = vector.load %arg9[%c0_35, %c0_36] : memref<8x1xf32, #tpu.memory_space<vmem>>, vector<8x1xf32>
      tpu.vector_store %arg9[%c0_35, %c0_36], %45 {strides = array<i32>} : memref<8x1xf32, #tpu.memory_space<vmem>>, vector<8x1xf32>,
      %cst_37 = arith.constant 0.000000e+00 : f32
      %47 = vector.broadcast %cst_37 : f32 to vector<8x128xf32>
      %c0_38 = arith.constant 0 : index
      %c0_39 = arith.constant 0 : index
      %48 = vector.load %arg10[%c0_38, %c0_39] : memref<8x128xf32, #tpu.memory_space<vmem>>, vector<8x128xf32>
      tpu.vector_store %arg10[%c0_38, %c0_39], %47 {strides = array<i32>} : memref<8x128xf32, #tpu.memory_space<vmem>>, vector<8x128xf32>,
    } else {
    }
    %c0 = arith.constant 0 : index
    %c0_1 = arith.constant 0 : index
    %3 = vector.load %arg7[%c0, %c0_1] : memref<8x32xbf16, #tpu.memory_space<vmem>>, vector<8x32xbf16>
    %c0_2 = arith.constant 0 : index
    %c0_3 = arith.constant 0 : index
    %c0_4 = arith.constant 0 : index
    %4 = vector.load %arg4[%c0_2, %c0_3, %c0_4] : memref<1x8x32xf32, #tpu.memory_space<vmem>>, vector<1x8x32xf32>
    %5 = vector.shape_cast %4 : vector<1x8x32xf32> to vector<8x32xf32>
    %6 = arith.truncf %5 : vector<8x32xf32> to vector<8x32xbf16>
    %cst = arith.constant dense<0.000000e+00> : vector<8x8xf32>
    %7 = tpu.matmul %3, %6, %cst {dimension_numbers = #tpu.dot_dimension_numbers<[1], [1], [0], [0], [0, 0, 1, 0], [], []>} : vector<8x32xbf16>, vector<8x32xbf16>, vector<8x8xf32> -> vector<8x8xf32>
    %c0_5 = arith.constant 0 : index
    %c0_6 = arith.constant 0 : index
    %8 = vector.load %arg8[%c0_5, %c0_6] : memref<8x1xf32, #tpu.memory_space<vmem>>, vector<8x1xf32>
    %cst_7 = arith.constant dense<0xFF800000> : vector<8xf32>
    %9 = vector.multi_reduction <maximumf>, %7, %cst_7 [1] : vector<8x8xf32> to vector<8xf32>
    %10 = vector.shape_cast %9 : vector<8xf32> to vector<8x1xf32>
    %11 = arith.maximumf %8, %10 : vector<8x1xf32>
    %12 = arith.subf %8, %11 : vector<8x1xf32>
    %13 = math.exp %12 : vector<8x1xf32>
    %14 = vector.broadcast %11 : vector<8x1xf32> to vector<8x8xf32>
    %15 = arith.subf %7, %14 : vector<8x8xf32>
    %16 = math.exp %15 : vector<8x8xf32>
    %c0_8 = arith.constant 0 : index
    %c0_9 = arith.constant 0 : index
    %17 = vector.load %arg9[%c0_8, %c0_9] : memref<8x1xf32, #tpu.memory_space<vmem>>, vector<8x1xf32>
    %18 = arith.mulf %13, %17 : vector<8x1xf32>
    %cst_10 = arith.constant dense<0.000000e+00> : vector<8xf32>
    %19 = vector.multi_reduction <add>, %16, %cst_10 [1] : vector<8x8xf32> to vector<8xf32>
    %20 = vector.shape_cast %19 : vector<8xf32> to vector<8x1xf32>
    %21 = arith.addf %18, %20 : vector<8x1xf32>
    %c0_11 = arith.constant 0 : index
    %c0_12 = arith.constant 0 : index
    %22 = vector.load %arg9[%c0_11, %c0_12] : memref<8x1xf32, #tpu.memory_space<vmem>>, vector<8x1xf32>
    tpu.vector_store %arg9[%c0_11, %c0_12], %21 {strides = array<i32>} : memref<8x1xf32, #tpu.memory_space<vmem>>, vector<8x1xf32>,
    %c0_13 = arith.constant 0 : index
    %c0_14 = arith.constant 0 : index
    %23 = vector.load %arg10[%c0_13, %c0_14] : memref<8x128xf32, #tpu.memory_space<vmem>>, vector<8x128xf32>
    %24 = vector.broadcast %13 : vector<8x1xf32> to vector<8x128xf32>
    %25 = arith.mulf %24, %23 : vector<8x128xf32>
    %26 = arith.truncf %16 : vector<8x8xf32> to vector<8x8xbf16>
    %c0_15 = arith.constant 0 : index
    %c0_16 = arith.constant 0 : index
    %c0_17 = arith.constant 0 : index
    %27 = vector.load %arg5[%c0_15, %c0_16, %c0_17] : memref<1x8x128xf32, #tpu.memory_space<vmem>>, vector<1x8x128xf32>
    %28 = vector.shape_cast %27 : vector<1x8x128xf32> to vector<8x128xf32>
    %29 = arith.truncf %28 : vector<8x128xf32> to vector<8x128xbf16>
    %cst_18 = arith.constant dense<0.000000e+00> : vector<8x128xf32>
    %30 = tpu.matmul %26, %29, %cst_18 {dimension_numbers = #tpu.dot_dimension_numbers<[1], [0], [0], [1], [0, 0, 1, 1], [], []>} : vector<8x8xbf16>, vector<8x128xbf16>, vector<8x128xf32> -> vector<8x128xf32>
    %31 = arith.addf %25, %30 : vector<8x128xf32>
    %c0_19 = arith.constant 0 : index
    %c0_20 = arith.constant 0 : index
    %32 = vector.load %arg10[%c0_19, %c0_20] : memref<8x128xf32, #tpu.memory_space<vmem>>, vector<8x128xf32>
    tpu.vector_store %arg10[%c0_19, %c0_20], %31 {strides = array<i32>} : memref<8x128xf32, #tpu.memory_space<vmem>>, vector<8x128xf32>,
    %c0_21 = arith.constant 0 : index
    %c0_22 = arith.constant 0 : index
    %33 = vector.load %arg8[%c0_21, %c0_22] : memref<8x1xf32, #tpu.memory_space<vmem>>, vector<8x1xf32>
    tpu.vector_store %arg8[%c0_21, %c0_22], %11 {strides = array<i32>} : memref<8x1xf32, #tpu.memory_space<vmem>>, vector<8x1xf32>,
    %c0_i32_23 = arith.constant 0 : i32
    %34 = arith.cmpi eq, %arg2, %c0_i32_23 : i32
    %35 = arith.extui %34 : i1 to i32
    %c0_i32_24 = arith.constant 0 : i32
    %36 = arith.cmpi ne, %35, %c0_i32_24 : i32
    scf.if %36 {
      %c0_25 = arith.constant 0 : index
      %c0_26 = arith.constant 0 : index
      %37 = vector.load %arg10[%c0_25, %c0_26] : memref<8x128xf32, #tpu.memory_space<vmem>>, vector<8x128xf32>
      %c0_27 = arith.constant 0 : index
      %c0_28 = arith.constant 0 : index
      %38 = vector.load %arg9[%c0_27, %c0_28] : memref<8x1xf32, #tpu.memory_space<vmem>>, vector<8x1xf32>
      %39 = tpu.reciprocal %38 : vector<8x1xf32> -> vector<8x1xf32>
      %40 = vector.broadcast %39 : vector<8x1xf32> to vector<8x128xf32>
      %41 = arith.mulf %37, %40 : vector<8x128xf32>
      %c0_29 = arith.constant 0 : index
      %c0_30 = arith.constant 0 : index
      %c0_31 = arith.constant 0 : index
      %42 = vector.load %arg6[%c0_29, %c0_30, %c0_31] : memref<1x8x128xf32, #tpu.memory_space<vmem>>, vector<1x8x128xf32>
      %43 = vector.shape_cast %42 : vector<1x8x128xf32> to vector<8x128xf32>
      %44 = vector.shape_cast %41 : vector<8x128xf32> to vector<1x8x128xf32>
      tpu.vector_store %arg6[%c0_29, %c0_30, %c0_31], %44 {strides = array<i32>} : memref<1x8x128xf32, #tpu.memory_space<vmem>>, vector<1x8x128xf32>,
    } else {
    }
    return
  }
  func.func @transform_0(%arg0: i32, %arg1: i32, %arg2: i32) -> (i32, i32, i32) {
    %c0_i32 = arith.constant 0 : i32
    %c0_i32_0 = arith.constant 0 : i32
    return %arg0, %arg1, %c0_i32 : i32, i32, i32
  }
  func.func @transform_1(%arg0: i32, %arg1: i32, %arg2: i32) -> (i32, i32, i32) {
    %c0_i32 = arith.constant 0 : i32
    %c0_i32_0 = arith.constant 0 : i32
    return %arg0, %arg2, %c0_i32 : i32, i32, i32
  }
  func.func @transform_2(%arg0: i32, %arg1: i32, %arg2: i32) -> (i32, i32, i32) {
    %c0_i32 = arith.constant 0 : i32
    %c0_i32_0 = arith.constant 0 : i32
    return %arg0, %arg2, %c0_i32 : i32, i32, i32
  }
  func.func @transform_3(%arg0: i32, %arg1: i32, %arg2: i32) -> (i32, i32, i32) {
    %c0_i32 = arith.constant 0 : i32
    %c0_i32_0 = arith.constant 0 : i32
    return %arg0, %arg1, %c0_i32 : i32, i32, i32
  }
}

</mosaic_0001>

<llo_original>
// kernel: tpu_custom_call.1
$region0: #{tpu_custom_call.1}
  #allocation0 [shape = 'u32[]', space=smem, size = 0x4, offset = 0x4, fixed_abs, tag = 'smem constant byte address 0x4 - core index']
  #allocation1 [shape = 'u32[144,128]{1,0:T(1,128)}', space=vmem, size = 0x12000, scoped, tag = 'internal scratch']
  #allocation2 [shape = 'bf16[8,32]{1,0:T(8,128)(2,1)}', space=vmem, size = 0x800, scoped, tag = 'scratch operand']
  #allocation3 [shape = 'f32[8,1]{1,0:T(8,128)}', space=vmem, size = 0x1000, scoped, tag = 'scratch operand']
  #allocation4 [shape = 'f32[8,1]{1,0:T(8,128)}', space=vmem, size = 0x1000, scoped, tag = 'scratch operand']
  #allocation5 [shape = 'f32[8,128]{1,0:T(8,128)}', space=vmem, size = 0x1000, scoped, tag = 'scratch operand']
  %s0 = inlined_call_operand.hbm [shape: f32[2,8,32], index: 0, kind: input, shape index: {}]
  %s1 = inlined_call_operand.hbm [shape: f32[2,8,32], index: 1, kind: input, shape index: {}]
  %s2 = inlined_call_operand.hbm [shape: f32[2,8,128], index: 2, kind: input, shape index: {}]
  %s3 = inlined_call_operand.hbm [shape: f32[2,8,128], index: 3, kind: output, shape index: {}]
  %s4 = sld [smem:[#allocation0]]
  $region65: #{tpu_custom_call.1} parent=0
    _
  %s6 = ssub.s32 1, %s4
  %s7 = scalar_select 0, %s6, %s4
  $region1: #{tpu_custom_call.1} parent=0
    #allocation6 [shape = 'u8[8192]{0}', space=vmem, size = 0x2000, scoped, tag = 'input window, operand 0']
    #allocation7 [shape = 's32[2]{0}', space=sflag, size = 0x8, scoped, tag = 'scoped memory for tpu_custom_call.1']
    #allocation8 [shape = 's32[2]{0}', space=sflag, size = 0x8, scoped, tag = 'scoped memory for tpu_custom_call.1']
    #allocation9 [shape = 'u8[8192]{0}', space=vmem, size = 0x2000, scoped, tag = 'input window, operand 1']
    #allocation10 [shape = 's32[2]{0}', space=sflag, size = 0x8, scoped, tag = 'scoped memory for tpu_custom_call.1']
    #allocation11 [shape = 'u8[8192]{0}', space=vmem, size = 0x2000, scoped, tag = 'input window, operand 2']
    #allocation12 [shape = 'u8[8192]{0}', space=vmem, size = 0x2000, scoped, tag = 'output window, operand 0']
    %8 = vsyncpa [#allocation7], 0
    %s9 = scalar_lea.sflag [#allocation7], 1
    %10 = vsyncpa %s9, 0
    %11 = vsyncpa [#allocation10], 0
    %s12 = scalar_lea.sflag [#allocation10], 1
    %13 = vsyncpa %s12, 0
    %14 = vsyncpa [#allocation8], 0
    %s15 = scalar_lea.sflag [#allocation8], 1
    %16 = vsyncpa %s15, 0
    loop: start=0, step=1, limit=4
    $region2: #{tpu_custom_call.1} parent=1 // loop_pre_header
      _
    $region3: #{tpu_custom_call.1} parent=1 // loop_header
      %s18 = sphi 0, %s22
      %p19 = scmp.ge.s32.totalorder %s18, 4
      %s25 = sphi 0, %s44
      %s26 = sphi 0, %s40
      %s27 = sphi 0, %s36
      %s28 = sphi 0, %s25
      %s29 = sphi 0, %s26
      %s30 = sphi 0, %s27
      %s31 = sphi 0, %s28
      %s32 = sphi 0, %s29
      %s33 = sphi 0, %s30
      %s49 = sphi 0, %s51
      %s52 = sphi 0, %s49
      %s53 = sphi 0, %s52
      %s69 = sphi 0, %s53
      %s77 = sphi 0, %s79
      %s80 = sphi 0, %s77
      %s81 = sphi 0, %s80
      %s97 = sphi 0, %s81
      %s105 = sphi 0, %s107
      %s108 = sphi 0, %s105
      %s109 = sphi 0, %s108
      %s125 = sphi 0, %s109
      %s133 = sphi 0, %s135
      %s136 = sphi 0, %s133
      %s137 = sphi 0, %s136
      %s153 = sphi 0, %s137
    $region4: #{tpu_custom_call.1} parent=1 // loop_header_branch
      %21 = sbr.rel (%p19) target = $region8
    $region5: #{tpu_custom_call.1} parent=1 // loop_body
      %s23 = ssub.s32 %s18, 1
      %s24 = ssub.s32 %s18, 2
      %s34 = sadd.s32 1, %s27
      %p35 = scmp.ge.s32.totalorder %s34, 1
      %s36 = scalar_select %p35, 0, %s34
      %s37 = sadd.s32 1, %s26
      %s38 = scalar_select %p35, %s37, %s26
      %p39 = scmp.ge.s32.totalorder %s38, 1
      %s40 = scalar_select %p39, 0, %s38
      %s41 = sadd.s32 1, %s25
      %s42 = scalar_select %p39, %s41, %s25
      %p43 = scmp.ge.s32.totalorder %s42, 2
      %s44 = scalar_select %p43, 0, %s42
      %s45 = ssub.s32 %s25, %s44
      %s46 = ssub.s32 %s26, %s40
      %s47 = sor.u32 %s45, %s46
      %p48 = scmp.eq.s32.totalorder %s47, 0
      %s50 = sadd.s32 %s49, 1
      %s51 = scalar_select %p48, %s49, %s50
      %p54 = pneg %p48
      %p55 = scmp.eq.s32.totalorder %s18, 1
      %p56 = por %p54, %p55
      %p57 = scmp.ne.s32.totalorder %s49, %s52
      %p58 = scmp.eq.s32.totalorder %s18, 0
      %p59 = por %p57, %p58
      %p60 = scmp.ne.s32.totalorder %s49, %s52
      %p61 = scmp.eq.s32.totalorder %s23, 1
      %p62 = por %p60, %p61
      %p63 = scmp.ne.s32.totalorder %s52, %s53
      %p64 = scmp.eq.s32.totalorder %s23, 0
      %p65 = por %p63, %p64
      %p66 = scmp.ne.s32.totalorder %s52, %s53
      %p67 = scmp.eq.s32.totalorder %s24, 1
      %p68 = por %p66, %p67
      %p70 = scmp.ne.s32.totalorder %s53, %s69
      %p71 = scmp.eq.s32.totalorder %s24, 0
      %p72 = por %p70, %p71
      %s73 = ssub.s32 %s25, %s44
      %s74 = ssub.s32 %s27, %s36
      %s75 = sor.u32 %s73, %s74
      %p76 = scmp.eq.s32.totalorder %s75, 0
      %s78 = sadd.s32 %s77, 1
      %s79 = scalar_select %p76, %s77, %s78
      %p82 = pneg %p76
      %p83 = scmp.eq.s32.totalorder %s18, 1
      %p84 = por %p82, %p83
      %p85 = scmp.ne.s32.totalorder %s77, %s80
      %p86 = scmp.eq.s32.totalorder %s18, 0
      %p87 = por %p85, %p86
      %p88 = scmp.ne.s32.totalorder %s77, %s80
      %p89 = scmp.eq.s32.totalorder %s23, 1
      %p90 = por %p88, %p89
      %p91 = scmp.ne.s32.totalorder %s80, %s81
      %p92 = scmp.eq.s32.totalorder %s23, 0
      %p93 = por %p91, %p92
      %p94 = scmp.ne.s32.totalorder %s80, %s81
      %p95 = scmp.eq.s32.totalorder %s24, 1
      %p96 = por %p94, %p95
      %p98 = scmp.ne.s32.totalorder %s81, %s97
      %p99 = scmp.eq.s32.totalorder %s24, 0
      %p100 = por %p98, %p99
      %s101 = ssub.s32 %s25, %s44
      %s102 = ssub.s32 %s27, %s36
      %s103 = sor.u32 %s101, %s102
      %p104 = scmp.eq.s32.totalorder %s103, 0
      %s106 = sadd.s32 %s105, 1
      %s107 = scalar_select %p104, %s105, %s106
      %p110 = pneg %p104
      %p111 = scmp.eq.s32.totalorder %s18, 1
      %p112 = por %p110, %p111
      %p113 = scmp.ne.s32.totalorder %s105, %s108
      %p114 = scmp.eq.s32.totalorder %s18, 0
      %p115 = por %p113, %p114
      %p116 = scmp.ne.s32.totalorder %s105, %s108
      %p117 = scmp.eq.s32.totalorder %s23, 1
      %p118 = por %p116, %p117
      %p119 = scmp.ne.s32.totalorder %s108, %s109
      %p120 = scmp.eq.s32.totalorder %s23, 0
      %p121 = por %p119, %p120
      %p122 = scmp.ne.s32.totalorder %s108, %s109
      %p123 = scmp.eq.s32.totalorder %s24, 1
      %p124 = por %p122, %p123
      %p126 = scmp.ne.s32.totalorder %s109, %s125
      %p127 = scmp.eq.s32.totalorder %s24, 0
      %p128 = por %p126, %p127
      %s129 = ssub.s32 %s25, %s44
      %s130 = ssub.s32 %s26, %s40
      %s131 = sor.u32 %s129, %s130
      %p132 = scmp.eq.s32.totalorder %s131, 0
      %s134 = sadd.s32 %s133, 1
      %s135 = scalar_select %p132, %s133, %s134
      %p138 = pneg %p132
      %p139 = scmp.eq.s32.totalorder %s18, 1
      %p140 = por %p138, %p139
      %p141 = scmp.ne.s32.totalorder %s133, %s136
      %p142 = scmp.eq.s32.totalorder %s18, 0
      %p143 = por %p141, %p142
      %p144 = scmp.ne.s32.totalorder %s133, %s136
      %p145 = scmp.eq.s32.totalorder %s23, 1
      %p146 = por %p144, %p145
      %p147 = scmp.ne.s32.totalorder %s136, %s137
      %p148 = scmp.eq.s32.totalorder %s23, 0
      %p149 = por %p147, %p148
      %p150 = scmp.ne.s32.totalorder %s136, %s137
      %p151 = scmp.eq.s32.totalorder %s24, 1
      %p152 = por %p150, %p151
      %p154 = scmp.ne.s32.totalorder %s137, %s153
      %p155 = scmp.eq.s32.totalorder %s24, 0
      %p156 = por %p154, %p155
      %p157 = scmp.le.s32.totalorder 1, %s18
      %p158 = scmp.lt.s32.totalorder %s18, 3
      %p159 = pnand %p157, %p158
      %p160 = pneg %p159
      // Predicated region
      $region9: #{tpu_custom_call.1} parent=5 // pred_check
        _
      $region10: #{tpu_custom_call.1} parent=5 // pred_check_branch
        %162 = sbr.rel (%p159) target = $region12
      $region11: #{tpu_custom_call.1} parent=5 // pred_region
        %s163 = ssub.s32 %s18, 1
      $region12: #{tpu_custom_call.1} parent=5 // pred_fallthru
        _
      %p164 = scmp.lt.s32.totalorder %s18, 2
      // Predicated region
      $region13: #{tpu_custom_call.1} parent=5 // pred_check
        %p165 = pneg %p164
      $region14: #{tpu_custom_call.1} parent=5 // pred_check_branch
        %167 = sbr.rel (%p165) target = $region16
      $region15: #{tpu_custom_call.1} parent=5 // pred_region
        // Predicated region
        $region17: #{tpu_custom_call.1} parent=15 // pred_check
          %p168 = pneg %p59
        $region18: #{tpu_custom_call.1} parent=15 // pred_check_branch
          %170 = sbr.rel (%p168) target = $region20
        $region19: #{tpu_custom_call.1} parent=15 // pred_region
          %s171 = sand.u32 %s49, 1
          %s172 = scalar_lea.sflag [#allocation7], %s171
          %s173 = sand.u32 %s49, 1
          %s174 = smul.addr %s173, 8
          %s175 = scalar_lea.vmem [#allocation6], %s174
          %s177 = ssub.s32 128, 128
          %178 = vsyncadd %s172, %s177
          %s179 = sadd.s32 %s26, %s25
          %s180 = smul.addr %s179, 128
          %s181 = scalar_lea.hbm %s0, %s180
          %s183 = sshll.u32 %s175, 4
          %s184 = int_to_ptr.vmem [resolvable:$true] %s183
          %186 = dma.hbm_to_vmem [thread:$0]  %s181, 128, %s184, %s172
        $region20: #{tpu_custom_call.1} parent=15 // pred_fallthru
          _
        // Predicated region
        $region21: #{tpu_custom_call.1} parent=15 // pred_check
          %p187 = pneg %p87
        $region22: #{tpu_custom_call.1} parent=15 // pred_check_branch
          %189 = sbr.rel (%p187) target = $region24
        $region23: #{tpu_custom_call.1} parent=15 // pred_region
          %s190 = sand.u32 %s18, 1
          %s191 = scalar_lea.sflag [#allocation10], %s190
          %s192 = sand.u32 %s77, 1
          %s193 = smul.addr %s192, 8
          %s194 = scalar_lea.vmem [#allocation9], %s193
          %s196 = ssub.s32 128, 128
          %197 = vsyncadd %s191, %s196
          %s198 = sadd.s32 %s27, %s25
          %s199 = smul.addr %s198, 128
          %s200 = scalar_lea.hbm %s1, %s199
          %s202 = sshll.u32 %s194, 4
          %s203 = int_to_ptr.vmem [resolvable:$true] %s202
          %205 = dma.hbm_to_vmem [thread:$0]  %s200, 128, %s203, %s191
        $region24: #{tpu_custom_call.1} parent=15 // pred_fallthru
          _
        // Predicated region
        $region25: #{tpu_custom_call.1} parent=15 // pred_check
          %p206 = pneg %p115
        $region26: #{tpu_custom_call.1} parent=15 // pred_check_branch
          %208 = sbr.rel (%p206) target = $region28
        $region27: #{tpu_custom_call.1} parent=15 // pred_region
          %s209 = sand.u32 %s18, 1
          %s210 = scalar_lea.sflag [#allocation10], %s209
          %s211 = sand.u32 %s105, 1
          %s212 = smul.addr %s211, 8
          %s213 = scalar_lea.vmem [#allocation11], %s212
          %s215 = ssub.s32 128, 128
          %216 = vsyncadd %s210, %s215
          %s217 = sadd.s32 %s27, %s25
          %s218 = smul.addr %s217, 128
          %s219 = scalar_lea.hbm %s2, %s218
          %s221 = sshll.u32 %s213, 4
          %s222 = int_to_ptr.vmem [resolvable:$true] %s221
          %224 = dma.hbm_to_vmem [thread:$0]  %s219, 128, %s222, %s210
        $region28: #{tpu_custom_call.1} parent=15 // pred_fallthru
          _
      $region16: #{tpu_custom_call.1} parent=5 // pred_fallthru
        _
      %p225 = scmp.le.s32.totalorder 1, %s18
      %p226 = scmp.lt.s32.totalorder %s18, 3
      %p227 = pnand %p225, %p226
      %p228 = pneg %p227
      // Predicated region
      $region29: #{tpu_custom_call.1} parent=5 // pred_check
        _
      $region30: #{tpu_custom_call.1} parent=5 // pred_check_branch
        %230 = sbr.rel (%p227) target = $region32
      $region31: #{tpu_custom_call.1} parent=5 // pred_region
        %s231 = ssub.s32 %s18, 1
        %s232 = sand.u32 %s52, 1
        %s233 = scalar_lea.sflag [#allocation7], %s232
        %s234 = sand.u32 %s52, 1
        %s235 = smul.addr %s234, 8
        %s236 = scalar_lea.vmem [#allocation6], %s235
        // Predicated region
        $region33: #{tpu_custom_call.1} parent=31 // pred_check
          %p237 = pneg %p65
        $region34: #{tpu_custom_call.1} parent=31 // pred_check_branch
          %239 = sbr.rel (%p237) target = $region36
        $region35: #{tpu_custom_call.1} parent=31 // pred_region
          %240 = dma.done %s233, 128
        $region36: #{tpu_custom_call.1} parent=31 // pred_fallthru
          _
        %s241 = sand.u32 %s23, 1
        %s242 = scalar_lea.sflag [#allocation10], %s241
        %s243 = sand.u32 %s80, 1
        %s244 = smul.addr %s243, 8
        %s245 = scalar_lea.vmem [#allocation9], %s244
        // Predicated region
        $region37: #{tpu_custom_call.1} parent=31 // pred_check
          %p246 = pneg %p93
        $region38: #{tpu_custom_call.1} parent=31 // pred_check_branch
          %248 = sbr.rel (%p246) target = $region40
        $region39: #{tpu_custom_call.1} parent=31 // pred_region
          %249 = dma.done %s242, 128
        $region40: #{tpu_custom_call.1} parent=31 // pred_fallthru
          _
        %s250 = sand.u32 %s23, 1
        %s251 = scalar_lea.sflag [#allocation10], %s250
        %s252 = sand.u32 %s108, 1
        %s253 = smul.addr %s252, 8
        %s254 = scalar_lea.vmem [#allocation11], %s253
        // Predicated region
        $region41: #{tpu_custom_call.1} parent=31 // pred_check
          %p255 = pneg %p121
        $region42: #{tpu_custom_call.1} parent=31 // pred_check_branch
          %257 = sbr.rel (%p255) target = $region44
        $region43: #{tpu_custom_call.1} parent=31 // pred_region
          %258 = dma.done %s251, 128
        $region44: #{tpu_custom_call.1} parent=31 // pred_fallthru
          _
        %s259 = sand.u32 %s52, 1
        %s260 = scalar_lea.sflag [#allocation7], %s259
        %s261 = sand.u32 %s52, 1
        %s262 = smul.addr %s261, 8
        %s263 = scalar_lea.vmem [#allocation6], %s262
        %p264 = pneg %p65
        %p265 = pneg %p62
        %s266 = sand.u32 %s23, 1
        %s267 = scalar_lea.sflag [#allocation10], %s266
        %s268 = sand.u32 %s80, 1
        %s269 = smul.addr %s268, 8
        %s270 = scalar_lea.vmem [#allocation9], %s269
        %p271 = pneg %p93
        %p272 = pneg %p90
        %s273 = sand.u32 %s23, 1
        %s274 = scalar_lea.sflag [#allocation10], %s273
        %s275 = sand.u32 %s108, 1
        %s276 = smul.addr %s275, 8
        %s277 = scalar_lea.vmem [#allocation11], %s276
        %p278 = pneg %p121
        %p279 = pneg %p118
        %p280 = pneg %p149
        %p281 = pneg %p146
        %s282 = sand.u32 %s136, 1
        %s283 = scalar_lea.sflag [#allocation8], %s282
        %s284 = sand.u32 %s136, 1
        %s285 = smul.addr %s284, 8
        %s286 = scalar_lea.vmem [#allocation12], %s285
        %p288 = scmp.eq.s32.totalorder %s30, 0
        // Predicated region
        $region45: #{tpu_custom_call.1} parent=31 // pred_check
          %p289 = pneg %p288
        $region46: #{tpu_custom_call.1} parent=31 // pred_check_branch
          %291 = sbr.rel (%p289) target = $region48
        $region47: #{tpu_custom_call.1} parent=31 // pred_region
          %v292 = vld [vmem:[%s236] sm:$0xff]
          %v293 = vmul.f32 %v292, 0.17677669
          %v294 = vpack.c.bf16 %v293, %v293
          %vm295 = vcmask 257024
          %296 = vst.msk [vmem:[#allocation2] sm:$0xf] %vm295, %v294
          %vm297 = vcmask 7168
          %298 = vst.msk [vmem:[#allocation3] sm:$0xff] %vm297, -inf
          %299 = vst.msk [vmem:[#allocation4] sm:$0xff] %vm297, 0.0
          %300 = vst [vmem:[#allocation5] sm:$0xff] 0.0
        $region48: #{tpu_custom_call.1} parent=31 // pred_fallthru
          _
        %v301 = vld [vmem:[#allocation2] sm:$0xf]
        %v302 = vld [vmem:[%s245] sm:$0xff]
        %v303 = vpack.c.bf16 %v302, %v302
        %vm304 = vcmask 261120
        %v306 = vsel %vm304, %v301, 0
        %v309 = vsel %vm304, %v303, 0
        %311 = vmatprep.subr.bf16.mxu0 0
        %312 = vmatpush1.bf16.xpose.msra.mxu0 %v309
        %313 = vmatprep.subr.bf16.mxu0 0
        %314 = vmatpush1.bf16.xpose.msra.mxu0 0
        %315 = vmatprep.subr.bf16.mxu0 0
        %316 = vmatpush1.bf16.xpose.msra.mxu0 0
        %317 = vmatprep.subr.bf16.mxu0 0
        %318 = vmatpush1.bf16.xpose.msra.mxu0 0
        %319 = vmatprep.subr.bf16.mxu0 0
        %320 = vmatpush1.bf16.xpose.msra.mxu0 0
        %321 = vmatprep.subr.bf16.mxu0 0
        %322 = vmatpush1.bf16.xpose.msra.mxu0 0
        %323 = vmatprep.subr.bf16.mxu0 0
        %324 = vmatpush1.bf16.xpose.msra.mxu0 0
        %325 = vmatprep.subr.bf16.mxu0 0
        %326 = vmatpush1.bf16.xpose.msra.mxu0 0
        %327 = vmatprep.subr.bf16.mxu0 0
        %328 = vmatpush1.bf16.xpose.msra.mxu0 0
        %329 = vmatprep.subr.bf16.mxu0 0
        %330 = vmatpush1.bf16.xpose.msra.mxu0 0
        %331 = vmatprep.subr.bf16.mxu0 0
        %332 = vmatpush1.bf16.xpose.msra.mxu0 0
        %333 = vmatprep.subr.bf16.mxu0 0
        %334 = vmatpush1.bf16.xpose.msra.mxu0 0
        %335 = vmatprep.subr.bf16.mxu0 0
        %336 = vmatpush1.bf16.xpose.msra.mxu0 0
        %337 = vmatprep.subr.bf16.mxu0 0
        %338 = vmatpush1.bf16.xpose.msra.mxu0 0
        %339 = vmatprep.subr.bf16.mxu0 0
        %340 = vmatpush1.bf16.xpose.msra.mxu0 0
        %341 = vmatprep.subr.bf16.mxu0 0
        %342 = vmatpush1.bf16.xpose.msra.mxu0 0
        %343 = vmatprep.mubr.bf16.mxu0 0
        %344 = vmatmul.mubr.bf16.gmra.mrb[0].mxu0 %v306
        %v345 = vpop.f32.mrb[0].mxu0
        %v346 = vadd.f32 0.0, %v345
        %v347 = vpop.f32.mrb[0].mxu0
        %v348 = vpop.f32.mrb[0].mxu0
        %v349 = vpop.f32.mrb[0].mxu0
        %350 = vdwg.mxu0
        %v351 = vld [vmem:[#allocation3] sm:$0xff]
        %vm352 = vcmask 64512
        %v353 = vsel %vm352, %v346, -inf
        %354 = vmax.xlane.f32.xlu0 %v353
        %v355 = vpop.xlane.xlu0 %354
        %v356 = vmax.f32 %v351, %v355
        %v357 = vsub.f32 %v351, %v356
        %v358 = vmul.f32 %v357, 1.442695
        %v359 = vpow.pop %v358
        %361 = vset.pattern.permute.xlu0 0
        %362 = vperm.xlu0 %361, %v356
        %v363 = vpop.permute.xlu0 %362
        %v365 = vsub.f32 %v346, %v363
        %v366 = vmul.f32 %v365, 1.442695
        %v367 = vpow.pop %v366
        %v368 = vld [vmem:[#allocation4] sm:$0xff]
        %v369 = vmul.f32 %v359, %v368
        %v370 = vsel %vm352, %v367, 0.0
        %371 = vadd.xlane.f32.xlu0 %v370
        %v372 = vpop.xlane.xlu0 %371
        %v373 = vadd.f32 %v369, %v372
        %vm374 = vcmask 7168
        %375 = vst.msk [vmem:[#allocation4] sm:$0xff] %vm374, %v373
        %v376 = vld [vmem:[#allocation5] sm:$0xff]
        %378 = vset.pattern.permute.xlu0 0
        %379 = vperm.xlu0 %378, %v359
        %v380 = vpop.permute.xlu0 %379
        %v382 = vmul.f32 %v380, %v376
        %v383 = vpack.c.bf16 %v367, %v367
        %v384 = vld [vmem:[%s254] sm:$0xff]
        %v385 = vpack.c.bf16 %v384, %v384
        %v387 = vsel %vm352, %v383, 0
        %vm389 = vcmask 1043456
        %v391 = vsel %vm389, %v385, 0
        %393 = vmatprep.subr.bf16.mxu0 0
        %394 = vmatpush1.bf16.msra.mxu0 %v391
        %395 = vmatprep.subr.bf16.mxu0 0
        %396 = vmatpush1.bf16.msra.mxu0 0
        %397 = vmatprep.subr.bf16.mxu0 0
        %398 = vmatpush1.bf16.msra.mxu0 0
        %399 = vmatprep.subr.bf16.mxu0 0
        %400 = vmatpush1.bf16.msra.mxu0 0
        %401 = vmatprep.subr.bf16.mxu0 0
        %402 = vmatpush1.bf16.msra.mxu0 0
        %403 = vmatprep.subr.bf16.mxu0 0
        %404 = vmatpush1.bf16.msra.mxu0 0
        %405 = vmatprep.subr.bf16.mxu0 0
        %406 = vmatpush1.bf16.msra.mxu0 0
        %407 = vmatprep.subr.bf16.mxu0 0
        %408 = vmatpush1.bf16.msra.mxu0 0
        %409 = vmatprep.subr.bf16.mxu0 0
        %410 = vmatpush1.bf16.msra.mxu0 0
        %411 = vmatprep.subr.bf16.mxu0 0
        %412 = vmatpush1.bf16.msra.mxu0 0
        %413 = vmatprep.subr.bf16.mxu0 0
        %414 = vmatpush1.bf16.msra.mxu0 0
        %415 = vmatprep.subr.bf16.mxu0 0
        %416 = vmatpush1.bf16.msra.mxu0 0
        %417 = vmatprep.subr.bf16.mxu0 0
        %418 = vmatpush1.bf16.msra.mxu0 0
        %419 = vmatprep.subr.bf16.mxu0 0
        %420 = vmatpush1.bf16.msra.mxu0 0
        %421 = vmatprep.subr.bf16.mxu0 0
        %422 = vmatpush1.bf16.msra.mxu0 0
        %423 = vmatprep.subr.bf16.mxu0 0
        %424 = vmatpush1.bf16.msra.mxu0 0
        %425 = vmatprep.mubr.bf16.mxu0 0
        %426 = vmatmul.mubr.bf16.gmra.mrb[0].mxu0 %v387
        %v427 = vpop.f32.mrb[0].mxu0
        %v428 = vadd.f32 0.0, %v427
        %v429 = vpop.f32.mrb[0].mxu0
        %v430 = vpop.f32.mrb[0].mxu0
        %v431 = vpop.f32.mrb[0].mxu0
        %432 = vdwg.mxu0
        %v433 = vadd.f32 %v382, %v428
        %434 = vst [vmem:[#allocation5] sm:$0xff] %v433
        %435 = vst.msk [vmem:[#allocation3] sm:$0xff] %vm374, %v356
        // Predicated region
        $region49: #{tpu_custom_call.1} parent=31 // pred_check
          %p436 = pneg %p288
        $region50: #{tpu_custom_call.1} parent=31 // pred_check_branch
          %438 = sbr.rel (%p436) target = $region52
        $region51: #{tpu_custom_call.1} parent=31 // pred_region
          %v439 = vld [vmem:[#allocation5] sm:$0xff]
          %v440 = vld [vmem:[#allocation4] sm:$0xff]
          %v441 = vrcp.pop %v440
          %443 = vset.pattern.permute.xlu0 0
          %444 = vperm.xlu0 %443, %v441
          %v445 = vpop.permute.xlu0 %444
          %v447 = vmul.f32 %v439, %v445
          %448 = vst [vmem:[%s286] sm:$0xff] %v447
        $region52: #{tpu_custom_call.1} parent=31 // pred_fallthru
          _
        %s449 = sand.u32 %s136, 1
        %s450 = scalar_lea.sflag [#allocation8], %s449
        %s451 = sand.u32 %s136, 1
        %s452 = smul.addr %s451, 8
        %s453 = scalar_lea.vmem [#allocation12], %s452
        // Predicated region
        $region53: #{tpu_custom_call.1} parent=31 // pred_check
          %p454 = pneg %p146
        $region54: #{tpu_custom_call.1} parent=31 // pred_check_branch
          %456 = sbr.rel (%p454) target = $region56
        $region55: #{tpu_custom_call.1} parent=31 // pred_region
          %s458 = ssub.s32 128, 128
          %459 = vsyncadd %s450, %s458
          %s460 = sadd.s32 %s29, %s28
          %s461 = smul.addr %s460, 128
          %s462 = scalar_lea.hbm %s3, %s461
          %s464 = sshll.u32 %s453, 4
          %s465 = int_to_ptr.vmem [resolvable:$true] %s464
          %467 = dma.vmem_to_hbm [thread:$0]  %s465, 128, %s462, %s450
        $region56: #{tpu_custom_call.1} parent=31 // pred_fallthru
          _
      $region32: #{tpu_custom_call.1} parent=5 // pred_fallthru
        _
      %p468 = scmp.le.s32.totalorder 2, %s18
      // Predicated region
      $region57: #{tpu_custom_call.1} parent=5 // pred_check
        %p469 = pneg %p468
      $region58: #{tpu_custom_call.1} parent=5 // pred_check_branch
        %471 = sbr.rel (%p469) target = $region60
      $region59: #{tpu_custom_call.1} parent=5 // pred_region
        %s472 = ssub.s32 %s18, 2
        // Predicated region
        $region61: #{tpu_custom_call.1} parent=59 // pred_check
          %p473 = pneg %p152
        $region62: #{tpu_custom_call.1} parent=59 // pred_check_branch
          %475 = sbr.rel (%p473) target = $region64
        $region63: #{tpu_custom_call.1} parent=59 // pred_region
          %s476 = sand.u32 %s137, 1
          %s477 = scalar_lea.sflag [#allocation8], %s476
          %s478 = sand.u32 %s137, 1
          %s479 = smul.addr %s478, 8
          %s480 = scalar_lea.vmem [#allocation12], %s479
          %481 = dma.done %s477, 128
        $region64: #{tpu_custom_call.1} parent=59 // pred_fallthru
          _
      $region60: #{tpu_custom_call.1} parent=5 // pred_fallthru
        _
    $region6: #{tpu_custom_call.1} parent=1 // loop_footer
      %s22 = sadd.s32 1, %s18
    $region7: #{tpu_custom_call.1} parent=1 // loop_footer_branch
      %17 = sbr.rel target = $region3
    $region8: #{tpu_custom_call.1} parent=1 // loop_exit
      _
    %482 = vsyncpa [#allocation7], 1
    %s483 = scalar_lea.sflag [#allocation7], 1
    %484 = vsyncpa %s483, 1
    %485 = vsyncpa [#allocation10], 1
    %s486 = scalar_lea.sflag [#allocation10], 1
    %487 = vsyncpa %s486, 1
    %488 = vsyncpa [#allocation8], 1
    %s489 = scalar_lea.sflag [#allocation8], 1
    %490 = vsyncpa %s489, 1

</llo_original>
